<compile_context>
chip_gen: v7x
topology: tpu7x:2x2x1
jax: 0.10.0
libtpu: 0.0.40
codegen_flags: <defaults>
</compile_context>

<pallas_src>
import functools

import jax
import jax.numpy as jnp
from jax import lax
from jax.experimental import pallas as pl
from jax.experimental.pallas import tpu as pltpu


def _round_up(n: int, m: int) -> int:
    return ((n + m - 1) // m) * m


def _nn_kernel(x_ref, w_ref, o_ref, *, d_out_valid, d_out_padded):
    # logits = x @ W.T without materializing W.T: contract dim 1 of x with dim 1 of W.
    logits = lax.dot_general(
        x_ref[...],
        w_ref[...],
        dimension_numbers=(((1,), (1,)), ((), ())),
        preferred_element_type=jnp.float32,
    )  # (tb, D_out_pad), f32

    # Mask padded output columns so they don't pollute the softmax denominator.
    if d_out_padded != d_out_valid:
        col = lax.broadcasted_iota(jnp.int32, logits.shape, 1)
        logits = jnp.where(col < d_out_valid, logits, -jnp.inf)

    # Numerically-stable softmax, elementwise math kept in f32 (VPU/EUP).
    m = jnp.max(logits, axis=-1, keepdims=True)
    e = jnp.exp(logits - m)
    denom = jnp.sum(e, axis=-1, keepdims=True)
    inv = pl.reciprocal(denom, approx=False)  # EUP reciprocal instead of VPU divide
    o_ref[...] = (e * inv).astype(o_ref.dtype)


def nn_forward(x, weight, *, matmul_dtype=jnp.bfloat16, block_b=256):
    """softmax(x @ weight.T, axis=-1).

    x: (B, D_in) float32; weight: (D_out, D_in) float32 (PyTorch Linear layout).
    matmul_dtype: dtype for the MXU inputs (accumulation and softmax stay f32).
    """
    B, D_in = x.shape
    D_out, D_in_w = weight.shape
    assert D_in == D_in_w

    in_dtype = jnp.dtype(matmul_dtype) if matmul_dtype is not None else x.dtype

    # Lane-dense output: pad D_out to a multiple of 128.
    D_out_pad = _round_up(D_out, 128)

    # Batch tiling: row blocks aligned to the sublane packing of the matmul dtype.
    packing = max(1, 4 // in_dtype.itemsize)
    row_align = 8 * packing
    B_pad = _round_up(B, row_align)
    tb = _round_up(min(block_b, B_pad), row_align)
    B_pad = _round_up(B_pad, tb)

    xp = x.astype(in_dtype)
    wp = weight.astype(in_dtype)
    if B_pad != B:
        xp = jnp.pad(xp, ((0, B_pad - B), (0, 0)))
    if D_out_pad != D_out:
        wp = jnp.pad(wp, ((0, D_out_pad - D_out), (0, 0)))

    grid = (B_pad // tb,)
    kernel = functools.partial(_nn_kernel, d_out_valid=D_out, d_out_padded=D_out_pad)

    out = pl.pallas_call(
        kernel,
        out_shape=jax.ShapeDtypeStruct((B_pad, D_out_pad), jnp.float32),
        grid=grid,
        in_specs=[
            # x: one batch tile per grid step (auto double-buffered).
            pl.BlockSpec((tb, D_in), lambda i: (i, 0)),
            # W: constant block index -> fetched once, stays resident in VMEM.
            pl.BlockSpec((D_out_pad, D_in), lambda i: (0, 0)),
        ],
        out_specs=pl.BlockSpec((tb, D_out_pad), lambda i: (i, 0)),
        compiler_params=pltpu.CompilerParams(
            # Batch tiles are independent -> shardable across TensorCores (v7x megacore).
            dimension_semantics=("parallel",),
        ),
    )(xp, wp)

    return out[:B, :D_out]


if __name__ == "__main__":
    # Small shapes consistent with the module: Linear(input_size, output_size, bias=False)
    batch = 8
    input_size = 32
    output_size = 8

    key = jax.random.PRNGKey(0)
    kx, kw = jax.random.split(key)
    x = jax.random.normal(kx, (batch, input_size), dtype=jnp.float32)
    # torch.nn.init.normal_(weight, 0.0, 1.0) -> standard normal, shape (out, in)
    weight = jax.random.normal(kw, (output_size, input_size), dtype=jnp.float32)

    # Default (bf16 MXU inputs) path: compare against a reference using the same cast.
    out_bf16 = jax.block_until_ready(nn_forward(x, weight))
    xb = x.astype(jnp.bfloat16).astype(jnp.float32)
    wb = weight.astype(jnp.bfloat16).astype(jnp.float32)
    ref_bf16 = jax.nn.softmax(xb @ wb.T, axis=-1)
    assert out_bf16.shape == (batch, output_size)
    assert jnp.allclose(out_bf16, ref_bf16, atol=1e-5, rtol=1e-5)
    assert jnp.allclose(jnp.sum(out_bf16, axis=-1), 1.0, atol=1e-5)

    # Full-f32 path: exact-math check against the plain-JAX reference (same as the module).
    out_f32 = jax.block_until_ready(nn_forward(x, weight, matmul_dtype=jnp.float32))
    ref_f32 = jax.nn.softmax(x @ weight.T, axis=-1)
    assert out_f32.shape == (batch, output_size)
    assert jnp.allclose(out_f32, ref_f32, atol=1e-5, rtol=1e-5)
    assert jnp.allclose(jnp.sum(out_f32, axis=-1), 1.0, atol=1e-5)

    print("KERNEL_OK")
</pallas_src>

<mosaic_0001>
module attributes {stable_mosaic.version = 11 : i64} {
  func.func @_nn_kernel(%arg0: i32, %arg1: memref<16x32xbf16, #tpu.memory_space<vmem>>, %arg2: memref<128x32xbf16, #tpu.memory_space<vmem>>, %arg3: memref<16x128xf32, #tpu.memory_space<vmem>>) attributes {dimension_semantics = [#tpu.dimension_semantics<parallel>], iteration_bounds = array<i64: 1>, scalar_prefetch = 0 : i64, scratch_operands = 0 : i64, tpu.core_type = #tpu.core_type<tc>, window_params = [{transform_indices = @transform_0, window_bounds = array<i64: 16, 32>}, {pipeline_mode = #tpu.pipeline_mode<synchronous>, transform_indices = @transform_1, window_bounds = array<i64: 128, 32>}, {transform_indices = @transform_2, window_bounds = array<i64: 16, 128>}]} {
    %c0 = arith.constant 0 : index
    %c0_0 = arith.constant 0 : index
    %0 = vector.load %arg1[%c0, %c0_0] : memref<16x32xbf16, #tpu.memory_space<vmem>>, vector<16x32xbf16>
    %c0_1 = arith.constant 0 : index
    %c0_2 = arith.constant 0 : index
    %1 = vector.load %arg2[%c0_1, %c0_2] : memref<128x32xbf16, #tpu.memory_space<vmem>>, vector<128x32xbf16>
    %cst = arith.constant dense<0.000000e+00> : vector<16x128xf32>
    %2 = tpu.matmul %0, %1, %cst {dimension_numbers = #tpu.dot_dimension_numbers<[1], [1], [0], [0], [0, 0, 1, 0], [], []>} : vector<16x32xbf16>, vector<128x32xbf16>, vector<16x128xf32> -> vector<16x128xf32>
    %3 = tpu.iota {dimensions = array<i32: 1>} : vector<16x128xi32>
    %c8_i32 = arith.constant 8 : i32
    %4 = vector.broadcast %c8_i32 : i32 to vector<16x128xi32>
    %5 = arith.cmpi slt, %3, %4 : vector<16x128xi32>
    %cst_3 = arith.constant 0xFF800000 : f32
    %6 = vector.broadcast %cst_3 : f32 to vector<16x128xf32>
    %7 = arith.select %5, %2, %6 : vector<16x128xi1>, vector<16x128xf32>
    %cst_4 = arith.constant dense<0xFF800000> : vector<16xf32>
    %8 = vector.multi_reduction <maximumf>, %7, %cst_4 [1] : vector<16x128xf32> to vector<16xf32>
    %9 = vector.shape_cast %8 : vector<16xf32> to vector<16x1xf32>
    %10 = vector.broadcast %9 : vector<16x1xf32> to vector<16x128xf32>
    %11 = arith.subf %7, %10 : vector<16x128xf32>
    %12 = math.exp %11 : vector<16x128xf32>
    %cst_5 = arith.constant dense<0.000000e+00> : vector<16xf32>
    %13 = vector.multi_reduction <add>, %12, %cst_5 [1] : vector<16x128xf32> to vector<16xf32>
    %14 = vector.shape_cast %13 : vector<16xf32> to vector<16x1xf32>
    %15 = tpu.reciprocal %14 : vector<16x1xf32> -> vector<16x1xf32>
    %16 = vector.broadcast %15 : vector<16x1xf32> to vector<16x128xf32>
    %17 = arith.mulf %12, %16 : vector<16x128xf32>
    %c0_6 = arith.constant 0 : index
    %c0_7 = arith.constant 0 : index
    %18 = vector.load %arg3[%c0_6, %c0_7] : memref<16x128xf32, #tpu.memory_space<vmem>>, vector<16x128xf32>
    tpu.vector_store %arg3[%c0_6, %c0_7], %17 {strides = array<i32>} : memref<16x128xf32, #tpu.memory_space<vmem>>, vector<16x128xf32>,
    return
  }
  func.func @transform_0(%arg0: i32) -> (i32, i32) {
    %c0_i32 = arith.constant 0 : i32
    %c0_i32_0 = arith.constant 0 : i32
    return %arg0, %c0_i32 : i32, i32
  }
  func.func @transform_1(%arg0: i32) -> (i32, i32) {
    %c0_i32 = arith.constant 0 : i32
    %c0_i32_0 = arith.constant 0 : i32
    %c0_i32_1 = arith.constant 0 : i32
    return %c0_i32, %c0_i32_0 : i32, i32
  }
  func.func @transform_2(%arg0: i32) -> (i32, i32) {
    %c0_i32 = arith.constant 0 : i32
    %c0_i32_0 = arith.constant 0 : i32
    return %arg0, %c0_i32 : i32, i32
  }
}

</mosaic_0001>

<llo_original>
// kernel: tpu_custom_call.1
$region0: #{tpu_custom_call.1}
  #allocation0 [shape = 'u32[]', space=smem, size = 0x4, offset = 0x4, fixed_abs, tag = 'smem constant byte address 0x4 - core index']
  #allocation1 [shape = 'u32[144,128]{1,0:T(1,128)}', space=vmem, size = 0x12000, scoped, tag = 'internal scratch']
  %s0 = inlined_call_operand.vmem [shape: bf16[16,32], index: 0, kind: input, shape index: {}]
  %s1 = inlined_call_operand.vmem [shape: bf16[128,32], index: 1, kind: input, shape index: {}]
  %s2 = inlined_call_operand.hbm [shape: f32[16,128], index: 2, kind: output, shape index: {}]
  %s3 = sld [smem:[#allocation0]]
  $region18: #{tpu_custom_call.1} parent=0
    _
  %s5 = ssub.s32 1, %s3
  %s6 = scalar_select 0, %s5, %s3
  $region1: #{tpu_custom_call.1} parent=0
    #allocation2 [shape = 'u8[8192]{0}', space=vmem, size = 0x2000, scoped, tag = 'output window, operand 0, single buffered']
    #allocation3 [shape = 's32[1]{0}', space=sflag, size = 0x4, scoped, tag = 'scoped memory for tpu_custom_call.1']
    %7 = vsyncpa [#allocation3], 0
    // Predicated region
    $region2: #{tpu_custom_call.1} parent=1 // pred_check
      _
    $region3: #{tpu_custom_call.1} parent=1 // pred_check_branch
      %9 = sbr.rel (0) target = $region5
    $region4: #{tpu_custom_call.1} parent=1 // pred_region
      _
    $region5: #{tpu_custom_call.1} parent=1 // pred_fallthru
      _
    // Predicated region
    $region6: #{tpu_custom_call.1} parent=1 // pred_check
      _
    $region7: #{tpu_custom_call.1} parent=1 // pred_check_branch
      %11 = sbr.rel (0) target = $region9
    $region8: #{tpu_custom_call.1} parent=1 // pred_region
      _
    $region9: #{tpu_custom_call.1} parent=1 // pred_fallthru
      _
    %v13 = vld [vmem:[%s0] sm:$0xf]
    %v14 = vld [vmem:[%s0 + $0x4] sm:$0xf]
    %v15 = vld [vmem:[%s1] sm:$0xf]
    %v16 = vld [vmem:[%s1 + $0x4] sm:$0xf]
    %v17 = vld [vmem:[%s1 + $0x8] sm:$0xf]
    %v18 = vld [vmem:[%s1 + $0xc] sm:$0xf]
    %v19 = vld [vmem:[%s1 + $0x10] sm:$0xf]
    %v20 = vld [vmem:[%s1 + $0x14] sm:$0xf]
    %v21 = vld [vmem:[%s1 + $0x18] sm:$0xf]
    %v22 = vld [vmem:[%s1 + $0x1c] sm:$0xf]
    %v23 = vld [vmem:[%s1 + $0x20] sm:$0xf]
    %v24 = vld [vmem:[%s1 + $0x24] sm:$0xf]
    %v25 = vld [vmem:[%s1 + $0x28] sm:$0xf]
    %v26 = vld [vmem:[%s1 + $0x2c] sm:$0xf]
    %v27 = vld [vmem:[%s1 + $0x30] sm:$0xf]
    %v28 = vld [vmem:[%s1 + $0x34] sm:$0xf]
    %v29 = vld [vmem:[%s1 + $0x38] sm:$0xf]
    %v30 = vld [vmem:[%s1 + $0x3c] sm:$0xf]
    %v33 = vunpack.c.l.b16 %v13
    %v34 = vunpack.c.l.b16 %v14
    %v35 = vpack.c.b16 %v34, %v33
    %v52 = vunpack.c.l.b16 %v15
    %v53 = vunpack.c.l.b16 %v16
    %v54 = vunpack.c.l.b16 %v17
    %v55 = vunpack.c.l.b16 %v18
    %v56 = vunpack.c.l.b16 %v19
    %v57 = vunpack.c.l.b16 %v20
    %v58 = vunpack.c.l.b16 %v21
    %v59 = vunpack.c.l.b16 %v22
    %v60 = vunpack.c.l.b16 %v23
    %v61 = vunpack.c.l.b16 %v24
    %v62 = vunpack.c.l.b16 %v25
    %v63 = vunpack.c.l.b16 %v26
    %v64 = vunpack.c.l.b16 %v27
    %v65 = vunpack.c.l.b16 %v28
    %v66 = vunpack.c.l.b16 %v29
    %v67 = vunpack.c.l.b16 %v30
    %v68 = vpack.c.b16 %v53, %v52
    %v69 = vpack.c.b16 %v55, %v54
    %v70 = vpack.c.b16 %v57, %v56
    %v71 = vpack.c.b16 %v59, %v58
    %v72 = vpack.c.b16 %v61, %v60
    %v73 = vpack.c.b16 %v63, %v62
    %v74 = vpack.c.b16 %v65, %v64
    %v75 = vpack.c.b16 %v67, %v66
    %vm76 = vcmask 261120
    %v78 = vsel %vm76, %v35, 0
    %v81 = vsel %vm76, %v68, 0
    %v84 = vsel %vm76, %v69, 0
    %v87 = vsel %vm76, %v70, 0
    %v90 = vsel %vm76, %v71, 0
    %v93 = vsel %vm76, %v72, 0
    %v96 = vsel %vm76, %v73, 0
    %v99 = vsel %vm76, %v74, 0
    %v102 = vsel %vm76, %v75, 0
    %104 = vmatprep.subr.bf16.mxu0 0
    %105 = vmatpush1.bf16.xpose.msra.mxu0 %v81
    %106 = vmatprep.subr.bf16.mxu0 0
    %107 = vmatpush1.bf16.xpose.msra.mxu0 %v84
    %108 = vmatprep.subr.bf16.mxu0 0
    %109 = vmatpush1.bf16.xpose.msra.mxu0 %v87
    %110 = vmatprep.subr.bf16.mxu0 0
    %111 = vmatpush1.bf16.xpose.msra.mxu0 %v90
    %112 = vmatprep.subr.bf16.mxu0 0
    %113 = vmatpush1.bf16.xpose.msra.mxu0 %v93
    %114 = vmatprep.subr.bf16.mxu0 0
    %115 = vmatpush1.bf16.xpose.msra.mxu0 %v96
    %116 = vmatprep.subr.bf16.mxu0 0
    %117 = vmatpush1.bf16.xpose.msra.mxu0 %v99
    %118 = vmatprep.subr.bf16.mxu0 0
    %119 = vmatpush1.bf16.xpose.msra.mxu0 %v102
    %120 = vmatprep.subr.bf16.mxu0 0
    %121 = vmatpush1.bf16.xpose.msra.mxu0 0
    %122 = vmatprep.subr.bf16.mxu0 0
    %123 = vmatpush1.bf16.xpose.msra.mxu0 0
    %124 = vmatprep.subr.bf16.mxu0 0
    %125 = vmatpush1.bf16.xpose.msra.mxu0 0
    %126 = vmatprep.subr.bf16.mxu0 0
    %127 = vmatpush1.bf16.xpose.msra.mxu0 0
    %128 = vmatprep.subr.bf16.mxu0 0
    %129 = vmatpush1.bf16.xpose.msra.mxu0 0
    %130 = vmatprep.subr.bf16.mxu0 0
    %131 = vmatpush1.bf16.xpose.msra.mxu0 0
    %132 = vmatprep.subr.bf16.mxu0 0
    %133 = vmatpush1.bf16.xpose.msra.mxu0 0
    %134 = vmatprep.subr.bf16.mxu0 0
    %135 = vmatpush1.bf16.xpose.msra.mxu0 0
    %136 = vmatprep.mubr.bf16.mxu0 0
    %137 = vmatmul.mubr.bf16.gmra.mrb[0].mxu0 %v78
    %v138 = vpop.f32.mrb[0].mxu0
    %v139 = vadd.f32 0.0, %v138
    %v140 = vpop.f32.mrb[0].mxu0
    %v141 = vpop.f32.mrb[0].mxu0
    %v142 = vadd.f32 0.0, %v141
    %v143 = vpop.f32.mrb[0].mxu0
    %144 = vdwg.mxu0
    %v145 = vlaneseq
    %v146 = vand.u32 %v145, 127
    %vm147 = vcmp.lt.s32.totalorder %v146, 8
    %v148 = vsel %vm147, %v139, -inf
    %v149 = vsel %vm147, %v142, -inf
    %150 = vmax.xlane.f32.xlu0 %v148
    %v151 = vpop.xlane.xlu0 %150
    %152 = vmax.xlane.f32.xlu0 %v149
    %v153 = vpop.xlane.xlu0 %152
    %v154 = vsub.f32 %v148, %v151
    %v155 = vsub.f32 %v149, %v153
    %v156 = vmul.f32 %v154, 1.442695
    %v157 = vpow.pop %v156
    %v158 = vmul.f32 %v155, 1.442695
    %v159 = vpow.pop %v158
    %160 = vadd.xlane.f32.xlu0 %v157
    %v161 = vpop.xlane.xlu0 %160
    %162 = vadd.xlane.f32.xlu0 %v159
    %v163 = vpop.xlane.xlu0 %162
    %v164 = vrcp.pop %v161
    %v165 = vrcp.pop %v163
    %v166 = vmul.f32 %v157, %v164
    %v167 = vmul.f32 %v159, %v165
    %168 = vst [vmem:[#allocation2] sm:$0xff] %v166
    %169 = vst [vmem:[#allocation2 + $0x8] sm:$0xff] %v167
    // Predicated region
    $region10: #{tpu_custom_call.1} parent=1 // pred_check
      _
    $region11: #{tpu_custom_call.1} parent=1 // pred_check_branch
      %171 = sbr.rel (0) target = $region13
    $region12: #{tpu_custom_call.1} parent=1 // pred_region
      %s173 = ssub.s32 256, 256
      %174 = vsyncadd [#allocation3], %s173
      %s175 = sshll.u32 [#allocation2], 4
      %s176 = int_to_ptr.vmem [resolvable:$true] %s175
      %181 = dma.vmem_to_hbm [thread:$0]  %s176, 256, %s2, [#allocation3], 128, 128, 8
    $region13: #{tpu_custom_call.1} parent=1 // pred_fallthru
      _
    // Predicated region
    $region14: #{tpu_custom_call.1} parent=1 // pred_check
      _
    $region15: #{tpu_custom_call.1} parent=1 // pred_check_branch
      %183 = sbr.rel (0) target = $region17
    $region16: #{tpu_custom_call.1} parent=1 // pred_region
      %184 = dma.done [#allocation3], 256
    $region17: #{tpu_custom_call.1} parent=1 // pred_fallthru
      _
    %185 = vsyncpa [#allocation3], 1

</llo_original>
